<compile_context>
chip_gen: v7x
topology: tpu7x:2x2x1
jax: 0.10.0
libtpu: 0.0.40
codegen_flags: <defaults>
</compile_context>

<pallas_src>
import math

import jax
import jax.numpy as jnp
from jax import lax
from jax.experimental import pallas as pl
from jax.experimental.pallas import tpu as pltpu
from jax.scipy.special import erfinv as _jerfinv, logsumexp as _jlogsumexp
from jax.scipy.stats import norm as _jnorm

_SQRT2 = 1.4142135623730951
_INV_SQRT2 = 0.7071067811865476
_EPS_F16 = 0.0009765625                  # torch.finfo(torch.float16).eps
_GM_C = 0.882                            # component offsets: mean + c*std, c in {-C, 0, +C}

# Abramowitz & Stegun 7.1.26 erfc coefficients (|error| < 1.5e-7 for y >= 0).
_AS_P = 0.3275911
_AS_A1 = 0.254829592
_AS_A2 = -0.284496736
_AS_A3 = 1.421413741
_AS_A4 = -1.453152027
_AS_A5 = 1.061405429


def _recip(x):
    """EUP approximate reciprocal + one Newton step (~f32 accuracy, VALU-cheap)."""
    r = pl.reciprocal(x, approx=True)
    return r * (2.0 - x * r)


def _erfc_pos(y):
    """A&S 7.1.26 erfc approximation, valid for y >= 0 (|err| < 1.5e-7)."""
    t = _recip(1.0 + _AS_P * y)
    poly = _AS_A5
    for c in (_AS_A4, _AS_A3, _AS_A2, _AS_A1):
        poly = c + poly * t
    return (poly * t) * jnp.exp(-y * y)


def _erfinv_f32(x):
    """Giles (2012) single-precision erfinv (same approximation XLA uses for f32)."""
    w = -jnp.log((1.0 - x) * (1.0 + x))
    # branch 1: w < 5
    w1 = w - 2.5
    p1 = 2.81022636e-08                      # python-float start: no full-tile constant
    for c in (3.43273939e-07, -3.5233877e-06, -4.39150654e-06, 0.00021858087,
              -0.00125372503, -0.00417768164, 0.246640727, 1.50140941):
        p1 = c + p1 * w1
    # branch 2: w >= 5 (after the f16-eps clamp w only reaches ~5.55, but the
    # f32 reference erfinv uses this branch there, so keep it for parity).
    w2 = jnp.sqrt(w) - 3.0
    p2 = -0.000200214257
    for c in (0.000100950558, 0.00134934322, -0.00367342844, 0.00573950773,
              -0.0076224613, 0.00943887047, 1.00167406, 2.83297682):
        p2 = c + p2 * w2
    return jnp.where(w < 5.0, p1, p2) * x


def gm_layernorm_kernel(x_ref, w_ref, b_ref, o_ref):
    x = x_ref[...].astype(jnp.float32)                          # (TB, N)
    n = x.shape[1]
    n_f = float(n)
    inv_n = 1.0 / n_f

    # ---- per-row mean / centered values / unbiased variance -----------------
    mean = jnp.sum(x, axis=1, keepdims=True) * inv_n            # (TB, 1)
    xc = x - mean                                               # centered
    ssq = jnp.sum(xc * xc, axis=1, keepdims=True)               # sum (x - mean)^2
    var = ssq * (1.0 / (n_f - 1.0))                             # torch.std (unbiased)
    inv_std = lax.rsqrt(var)                                    # (TB, 1)

    # ---- GMM "E-step": responsibilities of the 3 fixed components -----------
    # Components sit at mean + c*std (c in {-0.882, 0, 0.882}) with bandwidth
    # std/3.  In the softmax over components the common -0.5*t^2,
    # -log(sqrt(2*pi)) and -log(std) terms cancel, leaving
    #   lp_k = 3*c_k*t - 4.5*c_k^2,   t = 3*(x - mean)/std
    # i.e. lp_mid = 0, lp_{+/-} = +/-a - C with a = 2.646*t, C = 3.500658.
    c3 = 3.0 * _GM_C                                            # 2.646
    a = xc * ((3.0 * c3) * inv_std)                             # (TB, N)
    C = 0.5 * c3 * c3
    m = jnp.maximum(jnp.abs(a) - C, 0.0)                        # softmax stabilizer
    e_lo = jnp.exp(-a - C - m)                                  # comp @ mean - 0.882*std
    e_hi = jnp.exp(a - C - m)                                   # comp @ mean + 0.882*std
    inv_den = _recip(e_lo + jnp.exp(-m) + e_hi)                 # denominator in [1, 3]
    z_lo = e_lo * inv_den
    z_hi = e_hi * inv_den                                       # z_mid = 1 - z_lo - z_hi

    # ---- GMM "M-step" statistics ---------------------------------------------
    # Two components are reduced explicitly; the middle one follows from the
    # totals  sum(z) = N, sum(xc*z) = 0, sum(xc^2*z) = ssq.
    xz_lo = xc * z_lo
    xz_hi = xc * z_hi
    s0_lo = jnp.sum(z_lo, axis=1, keepdims=True)
    s1_lo = jnp.sum(xz_lo, axis=1, keepdims=True)
    s2_lo = jnp.sum(xz_lo * xc, axis=1, keepdims=True)
    s0_hi = jnp.sum(z_hi, axis=1, keepdims=True)
    s1_hi = jnp.sum(xz_hi, axis=1, keepdims=True)
    s2_hi = jnp.sum(xz_hi * xc, axis=1, keepdims=True)
    s0_mid = n_f - s0_lo - s0_hi
    s1_mid = -(s1_lo + s1_hi)
    s2_mid = ssq - s2_lo - s2_hi

    # ---- mixture CDF at every element ----------------------------------------
    cdf = jnp.zeros_like(x)
    for s0, s1, s2 in ((s0_lo, s1_lo, s2_lo),
                       (s0_mid, s1_mid, s2_mid),
                       (s0_hi, s1_hi, s2_hi)):
        inv_nk = 1.0 / s0                                       # per-row: negligible
        cm = s1 * inv_nk                                        # component mean (centered)
        gvar = jnp.maximum(s2 * inv_nk - cm * cm, 0.0)          # clamp fp rounding noise
        inv_gs = lax.rsqrt(gvar)                                # 1 / component std
        gp = s0 * inv_n                                         # component weight
        # Phi(v) = 0.5*erfc(-v/sqrt(2)),  v = (xc - cm) * inv_gs.  Fold the
        # per-row scale/shift so the per-element work is one mul/add + erfc.
        scale = -(inv_gs * _INV_SQRT2)                          # (TB, 1)
        shift = -(cm * scale)                                   # (TB, 1)
        yk = xc * scale + shift                                 # = -v/sqrt(2)
        e = _erfc_pos(jnp.abs(yk))
        cdf = cdf + (0.5 * gp) * jnp.where(yk >= 0.0, e, 2.0 - e)

    # ---- probit transform + affine -------------------------------------------
    cdf = jnp.clip(cdf, _EPS_F16, 1.0 - _EPS_F16)
    out = _SQRT2 * _erfinv_f32(2.0 * cdf - 1.0)
    out = out * w_ref[...].astype(jnp.float32) + b_ref[...].astype(jnp.float32)
    o_ref[...] = out.astype(o_ref.dtype)


def _vmem_capacity_bytes():
    try:
        return int(pltpu.get_tpu_info().vmem_capacity_bytes)
    except Exception:
        return 64 * 1024 * 1024            # conservative (v7x per-TC size)


def _choose_row_tile(b, n):
    """Row tile (multiple of 8, or the full row count when a single block).

    Targets ~1 MiB of f32 per x block and an even block count (>= 2) whenever
    there is more than one sublane tile of rows, so both v7x TensorCores get
    equal work (single-TC chips only pay ~0.35 us/extra step)."""
    b8 = ((b + 7) // 8) * 8
    nblk = max(1, -(-(b8 * 4 * n) // (1 << 20)))
    if b8 > 8:
        nblk = max(2, nblk)
        if nblk % 2:
            nblk += 1                       # even count for the two v7x TCs
    nblk = max(1, min(nblk, b8 // 8))
    tb = ((-(-b8 // nblk) + 7) // 8) * 8
    if tb >= b:
        return b, 1                         # single block == full array dim
    return tb, -(-b // tb)                  # cdiv; last block is a partial edge block


def gm_layernorm(x, weight, bias, norm_size):
    norm_size = tuple(norm_size)
    ndim = len(norm_size)
    extra = x.shape[:x.ndim - ndim]
    n = math.prod(norm_size)
    b = math.prod(extra) if extra else 1

    # No host-side casts / padding: native dtype goes straight into the kernel,
    # output comes back in x.dtype.  Ragged rows use Pallas partial edge blocks
    # (all reductions are per-row; out-of-bounds row stores are masked).
    x2 = x.reshape(b, n)
    w2 = weight.reshape(1, n)
    b2 = bias.reshape(1, n) if bias is not None else jnp.zeros((1, n), weight.dtype)

    tb, grid = _choose_row_tile(b, n)
    block_bytes = max(tb, 8) * n * 4
    # ~10 live (tb, n) f32 temporaries + double-buffered in/out blocks; keep
    # headroom below the physical per-core VMEM (64 MiB on v7x).
    vmem_limit = int(min(max(32 * 1024 * 1024, 20 * block_bytes),
                         (_vmem_capacity_bytes() * 3) // 4,
                         64 * 1024 * 1024))
    itemsize = jnp.dtype(x.dtype).itemsize
    cost = pl.CostEstimate(
        flops=int(150 * b * n),
        transcendentals=int(12 * b * n),
        bytes_accessed=int(itemsize * 2 * b * n + 8 * n),
    )

    out = pl.pallas_call(
        gm_layernorm_kernel,
        out_shape=jax.ShapeDtypeStruct((b, n), x.dtype),
        grid_spec=pltpu.PrefetchScalarGridSpec(
            num_scalar_prefetch=0,
            grid=(grid,),
            in_specs=[
                pl.BlockSpec((tb, n), lambda i: (i, 0)),   # x rows
                pl.BlockSpec((1, n), lambda i: (0, 0)),    # weight (broadcast)
                pl.BlockSpec((1, n), lambda i: (0, 0)),    # bias   (broadcast)
            ],
            out_specs=pl.BlockSpec((tb, n), lambda i: (i, 0)),
        ),
        compiler_params=pltpu.CompilerParams(
            dimension_semantics=("parallel",),
            vmem_limit_bytes=vmem_limit),
        cost_estimate=cost,
    )(x2, w2, b2)

    return out.reshape(extra + norm_size)


def gm_layernorm_ref(x, weight, bias, norm_size):
    """Pure-JAX mirror of the PyTorch GMLayerNorm.forward (validation only)."""
    norm_size = tuple(norm_size)
    ndim = len(norm_size)
    extra = x.shape[:x.ndim - ndim]
    n = math.prod(norm_size)
    b = math.prod(extra) if extra else 1

    xf = x.reshape(b, n).astype(jnp.float32)
    mean = jnp.mean(xf, axis=-1)
    std = jnp.std(xf, axis=-1, ddof=1)
    start_mean = jnp.stack((mean - 0.882 * std, mean, mean + 0.882 * std), axis=1)
    u = (xf[:, :, None] - start_mean[:, None, :]) / std[:, None, None] * 3.0
    logp = _jnorm.logpdf(u) - jnp.log(std)[:, None, None]
    z = jnp.exp(logp - _jlogsumexp(logp, axis=-1, keepdims=True))
    n_k = z.sum(axis=-2)
    gm = jnp.sum(xf[:, :, None] * z, axis=-2) / n_k
    gs = jnp.sqrt(jnp.sum(z * jnp.square(xf[:, :, None]), axis=-2) / n_k - jnp.square(gm))
    gp = n_k / n
    cdf = jnp.sum(gp[:, None, :]
                  * _jnorm.cdf((xf[:, :, None] - gm[:, None, :]) / gs[:, None, :]),
                  axis=-1)
    cdf = jnp.clip(cdf, _EPS_F16, 1.0 - _EPS_F16)
    y = _SQRT2 * _jerfinv(2.0 * cdf - 1.0)
    y = y.reshape(extra + norm_size) * weight.reshape(norm_size)
    if bias is not None:
        y = y + bias.reshape(norm_size)
    return y.astype(x.dtype)


if __name__ == "__main__":
    key = jax.random.PRNGKey(0)
    kx1, kx2, kw, kb = jax.random.split(key, 4)

    norm_size = (16, 16)
    weight = 1.0 + 0.1 * jax.random.normal(kw, norm_size, dtype=jnp.float32)
    bias = 0.1 * jax.random.normal(kb, norm_size, dtype=jnp.float32)

    # Case 1: NCHW input, normalize over (H, W) -> rows = B*C = 8, lanes = 256.
    x1 = jax.random.normal(kx1, (2, 4, 16, 16), dtype=jnp.float32)
    out1 = jax.block_until_ready(gm_layernorm(x1, weight, bias, norm_size))
    ref1 = jax.block_until_ready(gm_layernorm_ref(x1, weight, bias, norm_size))
    assert out1.shape == x1.shape
    assert bool(jnp.all(jnp.isfinite(out1)))
    assert float(jnp.max(jnp.abs(out1 - ref1))) < 1e-2

    # Case 2: ragged row count (B*C = 15) -> exercises the partial edge block
    # (masked stores) and a 2-step grid (both v7x TensorCores busy).
    x2 = jax.random.normal(kx2, (3, 5, 16, 16), dtype=jnp.float32)
    out2 = jax.block_until_ready(gm_layernorm(x2, weight, bias, norm_size))
    ref2 = jax.block_until_ready(gm_layernorm_ref(x2, weight, bias, norm_size))
    assert out2.shape == x2.shape
    assert bool(jnp.all(jnp.isfinite(out2)))
    assert float(jnp.max(jnp.abs(out2 - ref2))) < 1e-2

    print("KERNEL_OK")
</pallas_src>

<mosaic_0001>
module attributes {stable_mosaic.version = 11 : i64} {
  func.func @gm_layernorm_kernel(%arg0: i32, %arg1: memref<8x256xf32, #tpu.memory_space<vmem>>, %arg2: memref<1x256xf32, #tpu.memory_space<vmem>>, %arg3: memref<1x256xf32, #tpu.memory_space<vmem>>, %arg4: memref<8x256xf32, #tpu.memory_space<vmem>>) attributes {dimension_semantics = [#tpu.dimension_semantics<parallel>], iteration_bounds = array<i64: 1>, scalar_prefetch = 0 : i64, scratch_operands = 0 : i64, tpu.core_type = #tpu.core_type<tc>, window_params = [{transform_indices = @transform_0, window_bounds = array<i64: 8, 256>}, {pipeline_mode = #tpu.pipeline_mode<synchronous>, transform_indices = @transform_1, window_bounds = array<i64: 1, 256>}, {pipeline_mode = #tpu.pipeline_mode<synchronous>, transform_indices = @transform_2, window_bounds = array<i64: 1, 256>}, {transform_indices = @transform_3, window_bounds = array<i64: 8, 256>}]} {
    %c0 = arith.constant 0 : index
    %c0_0 = arith.constant 0 : index
    %0 = vector.load %arg1[%c0, %c0_0] : memref<8x256xf32, #tpu.memory_space<vmem>>, vector<8x256xf32>
    %cst = arith.constant dense<0.000000e+00> : vector<8xf32>
    %1 = vector.multi_reduction <add>, %0, %cst [1] : vector<8x256xf32> to vector<8xf32>
    %2 = vector.shape_cast %1 : vector<8xf32> to vector<8x1xf32>
    %cst_1 = arith.constant 3.906250e-03 : f32
    %3 = vector.broadcast %cst_1 : f32 to vector<8x1xf32>
    %4 = arith.mulf %2, %3 : vector<8x1xf32>
    %5 = vector.broadcast %4 : vector<8x1xf32> to vector<8x256xf32>
    %6 = arith.subf %0, %5 : vector<8x256xf32>
    %7 = arith.mulf %6, %6 : vector<8x256xf32>
    %cst_2 = arith.constant dense<0.000000e+00> : vector<8xf32>
    %8 = vector.multi_reduction <add>, %7, %cst_2 [1] : vector<8x256xf32> to vector<8xf32>
    %9 = vector.shape_cast %8 : vector<8xf32> to vector<8x1xf32>
    %cst_3 = arith.constant 0.00392156886 : f32
    %10 = vector.broadcast %cst_3 : f32 to vector<8x1xf32>
    %11 = arith.mulf %9, %10 : vector<8x1xf32>
    %12 = math.rsqrt %11 : vector<8x1xf32>
    %cst_4 = arith.constant 7.938000e+00 : f32
    %13 = vector.broadcast %cst_4 : f32 to vector<8x1xf32>
    %14 = arith.mulf %13, %12 : vector<8x1xf32>
    %15 = vector.broadcast %14 : vector<8x1xf32> to vector<8x256xf32>
    %16 = arith.mulf %6, %15 : vector<8x256xf32>
    %17 = math.absf %16 : vector<8x256xf32>
    %cst_5 = arith.constant 3.50065804 : f32
    %18 = vector.broadcast %cst_5 : f32 to vector<8x256xf32>
    %19 = arith.subf %17, %18 : vector<8x256xf32>
    %cst_6 = arith.constant 0.000000e+00 : f32
    %20 = vector.broadcast %cst_6 : f32 to vector<8x256xf32>
    %21 = arith.maximumf %19, %20 : vector<8x256xf32>
    %cst_7 = arith.constant 0.000000e+00 : f32
    %22 = vector.broadcast %cst_7 : f32 to vector<8x256xf32>
    %23 = arith.subf %22, %16 : vector<8x256xf32>
    %cst_8 = arith.constant 3.50065804 : f32
    %24 = vector.broadcast %cst_8 : f32 to vector<8x256xf32>
    %25 = arith.subf %23, %24 : vector<8x256xf32>
    %26 = arith.subf %25, %21 : vector<8x256xf32>
    %27 = math.exp %26 : vector<8x256xf32>
    %cst_9 = arith.constant 3.50065804 : f32
    %28 = vector.broadcast %cst_9 : f32 to vector<8x256xf32>
    %29 = arith.subf %16, %28 : vector<8x256xf32>
    %30 = arith.subf %29, %21 : vector<8x256xf32>
    %31 = math.exp %30 : vector<8x256xf32>
    %cst_10 = arith.constant 0.000000e+00 : f32
    %32 = vector.broadcast %cst_10 : f32 to vector<8x256xf32>
    %33 = arith.subf %32, %21 : vector<8x256xf32>
    %34 = math.exp %33 : vector<8x256xf32>
    %35 = arith.addf %27, %34 : vector<8x256xf32>
    %36 = arith.addf %35, %31 : vector<8x256xf32>
    %37 = tpu.reciprocal %36 {approx = true} : vector<8x256xf32> -> vector<8x256xf32>
    %38 = arith.mulf %36, %37 : vector<8x256xf32>
    %cst_11 = arith.constant 2.000000e+00 : f32
    %39 = vector.broadcast %cst_11 : f32 to vector<8x256xf32>
    %40 = arith.subf %39, %38 : vector<8x256xf32>
    %41 = arith.mulf %37, %40 : vector<8x256xf32>
    %42 = arith.mulf %27, %41 : vector<8x256xf32>
    %43 = arith.mulf %31, %41 : vector<8x256xf32>
    %44 = arith.mulf %6, %42 : vector<8x256xf32>
    %45 = arith.mulf %6, %43 : vector<8x256xf32>
    %cst_12 = arith.constant dense<0.000000e+00> : vector<8xf32>
    %46 = vector.multi_reduction <add>, %42, %cst_12 [1] : vector<8x256xf32> to vector<8xf32>
    %47 = vector.shape_cast %46 : vector<8xf32> to vector<8x1xf32>
    %cst_13 = arith.constant dense<0.000000e+00> : vector<8xf32>
    %48 = vector.multi_reduction <add>, %44, %cst_13 [1] : vector<8x256xf32> to vector<8xf32>
    %49 = vector.shape_cast %48 : vector<8xf32> to vector<8x1xf32>
    %50 = arith.mulf %44, %6 : vector<8x256xf32>
    %cst_14 = arith.constant dense<0.000000e+00> : vector<8xf32>
    %51 = vector.multi_reduction <add>, %50, %cst_14 [1] : vector<8x256xf32> to vector<8xf32>
    %52 = vector.shape_cast %51 : vector<8xf32> to vector<8x1xf32>
    %cst_15 = arith.constant dense<0.000000e+00> : vector<8xf32>
    %53 = vector.multi_reduction <add>, %43, %cst_15 [1] : vector<8x256xf32> to vector<8xf32>
    %54 = vector.shape_cast %53 : vector<8xf32> to vector<8x1xf32>
    %cst_16 = arith.constant dense<0.000000e+00> : vector<8xf32>
    %55 = vector.multi_reduction <add>, %45, %cst_16 [1] : vector<8x256xf32> to vector<8xf32>
    %56 = vector.shape_cast %55 : vector<8xf32> to vector<8x1xf32>
    %57 = arith.mulf %45, %6 : vector<8x256xf32>
    %cst_17 = arith.constant dense<0.000000e+00> : vector<8xf32>
    %58 = vector.multi_reduction <add>, %57, %cst_17 [1] : vector<8x256xf32> to vector<8xf32>
    %59 = vector.shape_cast %58 : vector<8xf32> to vector<8x1xf32>
    %cst_18 = arith.constant 2.560000e+02 : f32
    %60 = vector.broadcast %cst_18 : f32 to vector<8x1xf32>
    %61 = arith.subf %60, %47 : vector<8x1xf32>
    %62 = arith.subf %61, %54 : vector<8x1xf32>
    %63 = arith.addf %49, %56 : vector<8x1xf32>
    %cst_19 = arith.constant 0.000000e+00 : f32
    %64 = vector.broadcast %cst_19 : f32 to vector<8x1xf32>
    %65 = arith.subf %64, %63 : vector<8x1xf32>
    %66 = arith.subf %9, %52 : vector<8x1xf32>
    %67 = arith.subf %66, %59 : vector<8x1xf32>
    %cst_20 = arith.constant 0.000000e+00 : f32
    %68 = vector.broadcast %cst_20 : f32 to vector<8x256xf32>
    %cst_21 = arith.constant 1.000000e+00 : f32
    %69 = vector.broadcast %cst_21 : f32 to vector<8x1xf32>
    %70 = arith.divf %69, %47 : vector<8x1xf32>
    %71 = arith.mulf %49, %70 : vector<8x1xf32>
    %72 = arith.mulf %52, %70 : vector<8x1xf32>
    %73 = arith.mulf %71, %71 : vector<8x1xf32>
    %74 = arith.subf %72, %73 : vector<8x1xf32>
    %cst_22 = arith.constant 0.000000e+00 : f32
    %75 = vector.broadcast %cst_22 : f32 to vector<8x1xf32>
    %76 = arith.maximumf %74, %75 : vector<8x1xf32>
    %77 = math.rsqrt %76 : vector<8x1xf32>
    %cst_23 = arith.constant 3.906250e-03 : f32
    %78 = vector.broadcast %cst_23 : f32 to vector<8x1xf32>
    %79 = arith.mulf %47, %78 : vector<8x1xf32>
    %cst_24 = arith.constant 0.707106769 : f32
    %80 = vector.broadcast %cst_24 : f32 to vector<8x1xf32>
    %81 = arith.mulf %77, %80 : vector<8x1xf32>
    %cst_25 = arith.constant 0.000000e+00 : f32
    %82 = vector.broadcast %cst_25 : f32 to vector<8x1xf32>
    %83 = arith.subf %82, %81 : vector<8x1xf32>
    %84 = arith.mulf %71, %83 : vector<8x1xf32>
    %cst_26 = arith.constant 0.000000e+00 : f32
    %85 = vector.broadcast %cst_26 : f32 to vector<8x1xf32>
    %86 = arith.subf %85, %84 : vector<8x1xf32>
    %87 = vector.broadcast %83 : vector<8x1xf32> to vector<8x256xf32>
    %88 = arith.mulf %6, %87 : vector<8x256xf32>
    %89 = vector.broadcast %86 : vector<8x1xf32> to vector<8x256xf32>
    %90 = arith.addf %88, %89 : vector<8x256xf32>
    %91 = math.absf %90 : vector<8x256xf32>
    %cst_27 = arith.constant 0.327591091 : f32
    %92 = vector.broadcast %cst_27 : f32 to vector<8x256xf32>
    %93 = arith.mulf %92, %91 : vector<8x256xf32>
    %cst_28 = arith.constant 1.000000e+00 : f32
    %94 = vector.broadcast %cst_28 : f32 to vector<8x256xf32>
    %95 = arith.addf %94, %93 : vector<8x256xf32>
    %96 = tpu.reciprocal %95 {approx = true} : vector<8x256xf32> -> vector<8x256xf32>
    %97 = arith.mulf %95, %96 : vector<8x256xf32>
    %cst_29 = arith.constant 2.000000e+00 : f32
    %98 = vector.broadcast %cst_29 : f32 to vector<8x256xf32>
    %99 = arith.subf %98, %97 : vector<8x256xf32>
    %100 = arith.mulf %96, %99 : vector<8x256xf32>
    %cst_30 = arith.constant 1.06140542 : f32
    %101 = vector.broadcast %cst_30 : f32 to vector<8x256xf32>
    %102 = arith.mulf %101, %100 : vector<8x256xf32>
    %cst_31 = arith.constant -1.45315206 : f32
    %103 = vector.broadcast %cst_31 : f32 to vector<8x256xf32>
    %104 = arith.addf %103, %102 : vector<8x256xf32>
    %105 = arith.mulf %104, %100 : vector<8x256xf32>
    %cst_32 = arith.constant 1.42141378 : f32
    %106 = vector.broadcast %cst_32 : f32 to vector<8x256xf32>
    %107 = arith.addf %106, %105 : vector<8x256xf32>
    %108 = arith.mulf %107, %100 : vector<8x256xf32>
    %cst_33 = arith.constant -0.284496725 : f32
    %109 = vector.broadcast %cst_33 : f32 to vector<8x256xf32>
    %110 = arith.addf %109, %108 : vector<8x256xf32>
    %111 = arith.mulf %110, %100 : vector<8x256xf32>
    %cst_34 = arith.constant 0.254829586 : f32
    %112 = vector.broadcast %cst_34 : f32 to vector<8x256xf32>
    %113 = arith.addf %112, %111 : vector<8x256xf32>
    %114 = arith.mulf %113, %100 : vector<8x256xf32>
    %cst_35 = arith.constant 0.000000e+00 : f32
    %115 = vector.broadcast %cst_35 : f32 to vector<8x256xf32>
    %116 = arith.subf %115, %91 : vector<8x256xf32>
    %117 = arith.mulf %116, %91 : vector<8x256xf32>
    %118 = math.exp %117 : vector<8x256xf32>
    %119 = arith.mulf %114, %118 : vector<8x256xf32>
    %cst_36 = arith.constant 5.000000e-01 : f32
    %120 = vector.broadcast %cst_36 : f32 to vector<8x1xf32>
    %121 = arith.mulf %120, %79 : vector<8x1xf32>
    %cst_37 = arith.constant 0.000000e+00 : f32
    %122 = vector.broadcast %cst_37 : f32 to vector<8x256xf32>
    %123 = arith.cmpf oge, %90, %122 : vector<8x256xf32>
    %cst_38 = arith.constant 2.000000e+00 : f32
    %124 = vector.broadcast %cst_38 : f32 to vector<8x256xf32>
    %125 = arith.subf %124, %119 : vector<8x256xf32>
    %126 = arith.select %123, %119, %125 : vector<8x256xi1>, vector<8x256xf32>
    %127 = vector.broadcast %121 : vector<8x1xf32> to vector<8x256xf32>
    %128 = arith.mulf %127, %126 : vector<8x256xf32>
    %129 = arith.addf %68, %128 : vector<8x256xf32>
    %cst_39 = arith.constant 1.000000e+00 : f32
    %130 = vector.broadcast %cst_39 : f32 to vector<8x1xf32>
    %131 = arith.divf %130, %62 : vector<8x1xf32>
    %132 = arith.mulf %65, %131 : vector<8x1xf32>
    %133 = arith.mulf %67, %131 : vector<8x1xf32>
    %134 = arith.mulf %132, %132 : vector<8x1xf32>
    %135 = arith.subf %133, %134 : vector<8x1xf32>
    %cst_40 = arith.constant 0.000000e+00 : f32
    %136 = vector.broadcast %cst_40 : f32 to vector<8x1xf32>
    %137 = arith.maximumf %135, %136 : vector<8x1xf32>
    %138 = math.rsqrt %137 : vector<8x1xf32>
    %cst_41 = arith.constant 3.906250e-03 : f32
    %139 = vector.broadcast %cst_41 : f32 to vector<8x1xf32>
    %140 = arith.mulf %62, %139 : vector<8x1xf32>
    %cst_42 = arith.constant 0.707106769 : f32
    %141 = vector.broadcast %cst_42 : f32 to vector<8x1xf32>
    %142 = arith.mulf %138, %141 : vector<8x1xf32>
    %cst_43 = arith.constant 0.000000e+00 : f32
    %143 = vector.broadcast %cst_43 : f32 to vector<8x1xf32>
    %144 = arith.subf %143, %142 : vector<8x1xf32>
    %145 = arith.mulf %132, %144 : vector<8x1xf32>
    %cst_44 = arith.constant 0.000000e+00 : f32
    %146 = vector.broadcast %cst_44 : f32 to vector<8x1xf32>
    %147 = arith.subf %146, %145 : vector<8x1xf32>
    %148 = vector.broadcast %144 : vector<8x1xf32> to vector<8x256xf32>
    %149 = arith.mulf %6, %148 : vector<8x256xf32>
    %150 = vector.broadcast %147 : vector<8x1xf32> to vector<8x256xf32>
    %151 = arith.addf %149, %150 : vector<8x256xf32>
    %152 = math.absf %151 : vector<8x256xf32>
    %cst_45 = arith.constant 0.327591091 : f32
    %153 = vector.broadcast %cst_45 : f32 to vector<8x256xf32>
    %154 = arith.mulf %153, %152 : vector<8x256xf32>
    %cst_46 = arith.constant 1.000000e+00 : f32
    %155 = vector.broadcast %cst_46 : f32 to vector<8x256xf32>
    %156 = arith.addf %155, %154 : vector<8x256xf32>
    %157 = tpu.reciprocal %156 {approx = true} : vector<8x256xf32> -> vector<8x256xf32>
    %158 = arith.mulf %156, %157 : vector<8x256xf32>
    %cst_47 = arith.constant 2.000000e+00 : f32
    %159 = vector.broadcast %cst_47 : f32 to vector<8x256xf32>
    %160 = arith.subf %159, %158 : vector<8x256xf32>
    %161 = arith.mulf %157, %160 : vector<8x256xf32>
    %cst_48 = arith.constant 1.06140542 : f32
    %162 = vector.broadcast %cst_48 : f32 to vector<8x256xf32>
    %163 = arith.mulf %162, %161 : vector<8x256xf32>
    %cst_49 = arith.constant -1.45315206 : f32
    %164 = vector.broadcast %cst_49 : f32 to vector<8x256xf32>
    %165 = arith.addf %164, %163 : vector<8x256xf32>
    %166 = arith.mulf %165, %161 : vector<8x256xf32>
    %cst_50 = arith.constant 1.42141378 : f32
    %167 = vector.broadcast %cst_50 : f32 to vector<8x256xf32>
    %168 = arith.addf %167, %166 : vector<8x256xf32>
    %169 = arith.mulf %168, %161 : vector<8x256xf32>
    %cst_51 = arith.constant -0.284496725 : f32
    %170 = vector.broadcast %cst_51 : f32 to vector<8x256xf32>
    %171 = arith.addf %170, %169 : vector<8x256xf32>
    %172 = arith.mulf %171, %161 : vector<8x256xf32>
    %cst_52 = arith.constant 0.254829586 : f32
    %173 = vector.broadcast %cst_52 : f32 to vector<8x256xf32>
    %174 = arith.addf %173, %172 : vector<8x256xf32>
    %175 = arith.mulf %174, %161 : vector<8x256xf32>
    %cst_53 = arith.constant 0.000000e+00 : f32
    %176 = vector.broadcast %cst_53 : f32 to vector<8x256xf32>
    %177 = arith.subf %176, %152 : vector<8x256xf32>
    %178 = arith.mulf %177, %152 : vector<8x256xf32>
    %179 = math.exp %178 : vector<8x256xf32>
    %180 = arith.mulf %175, %179 : vector<8x256xf32>
    %cst_54 = arith.constant 5.000000e-01 : f32
    %181 = vector.broadcast %cst_54 : f32 to vector<8x1xf32>
    %182 = arith.mulf %181, %140 : vector<8x1xf32>
    %cst_55 = arith.constant 0.000000e+00 : f32
    %183 = vector.broadcast %cst_55 : f32 to vector<8x256xf32>
    %184 = arith.cmpf oge, %151, %183 : vector<8x256xf32>
    %cst_56 = arith.constant 2.000000e+00 : f32
    %185 = vector.broadcast %cst_56 : f32 to vector<8x256xf32>
    %186 = arith.subf %185, %180 : vector<8x256xf32>
    %187 = arith.select %184, %180, %186 : vector<8x256xi1>, vector<8x256xf32>
    %188 = vector.broadcast %182 : vector<8x1xf32> to vector<8x256xf32>
    %189 = arith.mulf %188, %187 : vector<8x256xf32>
    %190 = arith.addf %129, %189 : vector<8x256xf32>
    %cst_57 = arith.constant 1.000000e+00 : f32
    %191 = vector.broadcast %cst_57 : f32 to vector<8x1xf32>
    %192 = arith.divf %191, %54 : vector<8x1xf32>
    %193 = arith.mulf %56, %192 : vector<8x1xf32>
    %194 = arith.mulf %59, %192 : vector<8x1xf32>
    %195 = arith.mulf %193, %193 : vector<8x1xf32>
    %196 = arith.subf %194, %195 : vector<8x1xf32>
    %cst_58 = arith.constant 0.000000e+00 : f32
    %197 = vector.broadcast %cst_58 : f32 to vector<8x1xf32>
    %198 = arith.maximumf %196, %197 : vector<8x1xf32>
    %199 = math.rsqrt %198 : vector<8x1xf32>
    %cst_59 = arith.constant 3.906250e-03 : f32
    %200 = vector.broadcast %cst_59 : f32 to vector<8x1xf32>
    %201 = arith.mulf %54, %200 : vector<8x1xf32>
    %cst_60 = arith.constant 0.707106769 : f32
    %202 = vector.broadcast %cst_60 : f32 to vector<8x1xf32>
    %203 = arith.mulf %199, %202 : vector<8x1xf32>
    %cst_61 = arith.constant 0.000000e+00 : f32
    %204 = vector.broadcast %cst_61 : f32 to vector<8x1xf32>
    %205 = arith.subf %204, %203 : vector<8x1xf32>
    %206 = arith.mulf %193, %205 : vector<8x1xf32>
    %cst_62 = arith.constant 0.000000e+00 : f32
    %207 = vector.broadcast %cst_62 : f32 to vector<8x1xf32>
    %208 = arith.subf %207, %206 : vector<8x1xf32>
    %209 = vector.broadcast %205 : vector<8x1xf32> to vector<8x256xf32>
    %210 = arith.mulf %6, %209 : vector<8x256xf32>
    %211 = vector.broadcast %208 : vector<8x1xf32> to vector<8x256xf32>
    %212 = arith.addf %210, %211 : vector<8x256xf32>
    %213 = math.absf %212 : vector<8x256xf32>
    %cst_63 = arith.constant 0.327591091 : f32
    %214 = vector.broadcast %cst_63 : f32 to vector<8x256xf32>
    %215 = arith.mulf %214, %213 : vector<8x256xf32>
    %cst_64 = arith.constant 1.000000e+00 : f32
    %216 = vector.broadcast %cst_64 : f32 to vector<8x256xf32>
    %217 = arith.addf %216, %215 : vector<8x256xf32>
    %218 = tpu.reciprocal %217 {approx = true} : vector<8x256xf32> -> vector<8x256xf32>
    %219 = arith.mulf %217, %218 : vector<8x256xf32>
    %cst_65 = arith.constant 2.000000e+00 : f32
    %220 = vector.broadcast %cst_65 : f32 to vector<8x256xf32>
    %221 = arith.subf %220, %219 : vector<8x256xf32>
    %222 = arith.mulf %218, %221 : vector<8x256xf32>
    %cst_66 = arith.constant 1.06140542 : f32
    %223 = vector.broadcast %cst_66 : f32 to vector<8x256xf32>
    %224 = arith.mulf %223, %222 : vector<8x256xf32>
    %cst_67 = arith.constant -1.45315206 : f32
    %225 = vector.broadcast %cst_67 : f32 to vector<8x256xf32>
    %226 = arith.addf %225, %224 : vector<8x256xf32>
    %227 = arith.mulf %226, %222 : vector<8x256xf32>
    %cst_68 = arith.constant 1.42141378 : f32
    %228 = vector.broadcast %cst_68 : f32 to vector<8x256xf32>
    %229 = arith.addf %228, %227 : vector<8x256xf32>
    %230 = arith.mulf %229, %222 : vector<8x256xf32>
    %cst_69 = arith.constant -0.284496725 : f32
    %231 = vector.broadcast %cst_69 : f32 to vector<8x256xf32>
    %232 = arith.addf %231, %230 : vector<8x256xf32>
    %233 = arith.mulf %232, %222 : vector<8x256xf32>
    %cst_70 = arith.constant 0.254829586 : f32
    %234 = vector.broadcast %cst_70 : f32 to vector<8x256xf32>
    %235 = arith.addf %234, %233 : vector<8x256xf32>
    %236 = arith.mulf %235, %222 : vector<8x256xf32>
    %cst_71 = arith.constant 0.000000e+00 : f32
    %237 = vector.broadcast %cst_71 : f32 to vector<8x256xf32>
    %238 = arith.subf %237, %213 : vector<8x256xf32>
    %239 = arith.mulf %238, %213 : vector<8x256xf32>
    %240 = math.exp %239 : vector<8x256xf32>
    %241 = arith.mulf %236, %240 : vector<8x256xf32>
    %cst_72 = arith.constant 5.000000e-01 : f32
    %242 = vector.broadcast %cst_72 : f32 to vector<8x1xf32>
    %243 = arith.mulf %242, %201 : vector<8x1xf32>
    %cst_73 = arith.constant 0.000000e+00 : f32
    %244 = vector.broadcast %cst_73 : f32 to vector<8x256xf32>
    %245 = arith.cmpf oge, %212, %244 : vector<8x256xf32>
    %cst_74 = arith.constant 2.000000e+00 : f32
    %246 = vector.broadcast %cst_74 : f32 to vector<8x256xf32>
    %247 = arith.subf %246, %241 : vector<8x256xf32>
    %248 = arith.select %245, %241, %247 : vector<8x256xi1>, vector<8x256xf32>
    %249 = vector.broadcast %243 : vector<8x1xf32> to vector<8x256xf32>
    %250 = arith.mulf %249, %248 : vector<8x256xf32>
    %251 = arith.addf %190, %250 : vector<8x256xf32>
    %cst_75 = arith.constant 9.765625E-4 : f32
    %cst_76 = arith.constant 0.999023437 : f32
    %252 = vector.broadcast %cst_75 : f32 to vector<8x256xf32>
    %253 = arith.maximumf %252, %251 : vector<8x256xf32>
    %254 = vector.broadcast %cst_76 : f32 to vector<8x256xf32>
    %255 = arith.minimumf %254, %253 : vector<8x256xf32>
    %cst_77 = arith.constant 2.000000e+00 : f32
    %256 = vector.broadcast %cst_77 : f32 to vector<8x256xf32>
    %257 = arith.mulf %256, %255 : vector<8x256xf32>
    %cst_78 = arith.constant 1.000000e+00 : f32
    %258 = vector.broadcast %cst_78 : f32 to vector<8x256xf32>
    %259 = arith.subf %257, %258 : vector<8x256xf32>
    %cst_79 = arith.constant 1.000000e+00 : f32
    %260 = vector.broadcast %cst_79 : f32 to vector<8x256xf32>
    %261 = arith.subf %260, %259 : vector<8x256xf32>
    %cst_80 = arith.constant 1.000000e+00 : f32
    %262 = vector.broadcast %cst_80 : f32 to vector<8x256xf32>
    %263 = arith.addf %262, %259 : vector<8x256xf32>
    %264 = arith.mulf %261, %263 : vector<8x256xf32>
    %265 = math.log %264 : vector<8x256xf32>
    %cst_81 = arith.constant 0.000000e+00 : f32
    %266 = vector.broadcast %cst_81 : f32 to vector<8x256xf32>
    %267 = arith.subf %266, %265 : vector<8x256xf32>
    %cst_82 = arith.constant 2.500000e+00 : f32
    %268 = vector.broadcast %cst_82 : f32 to vector<8x256xf32>
    %269 = arith.subf %267, %268 : vector<8x256xf32>
    %cst_83 = arith.constant 2.81022636E-8 : f32
    %270 = vector.broadcast %cst_83 : f32 to vector<8x256xf32>
    %271 = arith.mulf %270, %269 : vector<8x256xf32>
    %cst_84 = arith.constant 3.43273939E-7 : f32
    %272 = vector.broadcast %cst_84 : f32 to vector<8x256xf32>
    %273 = arith.addf %272, %271 : vector<8x256xf32>
    %274 = arith.mulf %273, %269 : vector<8x256xf32>
    %cst_85 = arith.constant -3.5233877E-6 : f32
    %275 = vector.broadcast %cst_85 : f32 to vector<8x256xf32>
    %276 = arith.addf %275, %274 : vector<8x256xf32>
    %277 = arith.mulf %276, %269 : vector<8x256xf32>
    %cst_86 = arith.constant -4.39150654E-6 : f32
    %278 = vector.broadcast %cst_86 : f32 to vector<8x256xf32>
    %279 = arith.addf %278, %277 : vector<8x256xf32>
    %280 = arith.mulf %279, %269 : vector<8x256xf32>
    %cst_87 = arith.constant 2.1858087E-4 : f32
    %281 = vector.broadcast %cst_87 : f32 to vector<8x256xf32>
    %282 = arith.addf %281, %280 : vector<8x256xf32>
    %283 = arith.mulf %282, %269 : vector<8x256xf32>
    %cst_88 = arith.constant -0.00125372503 : f32
    %284 = vector.broadcast %cst_88 : f32 to vector<8x256xf32>
    %285 = arith.addf %284, %283 : vector<8x256xf32>
    %286 = arith.mulf %285, %269 : vector<8x256xf32>
    %cst_89 = arith.constant -0.00417768164 : f32
    %287 = vector.broadcast %cst_89 : f32 to vector<8x256xf32>
    %288 = arith.addf %287, %286 : vector<8x256xf32>
    %289 = arith.mulf %288, %269 : vector<8x256xf32>
    %cst_90 = arith.constant 0.246640727 : f32
    %290 = vector.broadcast %cst_90 : f32 to vector<8x256xf32>
    %291 = arith.addf %290, %289 : vector<8x256xf32>
    %292 = arith.mulf %291, %269 : vector<8x256xf32>
    %cst_91 = arith.constant 1.50140941 : f32
    %293 = vector.broadcast %cst_91 : f32 to vector<8x256xf32>
    %294 = arith.addf %293, %292 : vector<8x256xf32>
    %295 = math.sqrt %267 : vector<8x256xf32>
    %cst_92 = arith.constant 3.000000e+00 : f32
    %296 = vector.broadcast %cst_92 : f32 to vector<8x256xf32>
    %297 = arith.subf %295, %296 : vector<8x256xf32>
    %cst_93 = arith.constant -2.00214257E-4 : f32
    %298 = vector.broadcast %cst_93 : f32 to vector<8x256xf32>
    %299 = arith.mulf %298, %297 : vector<8x256xf32>
    %cst_94 = arith.constant 1.00950558E-4 : f32
    %300 = vector.broadcast %cst_94 : f32 to vector<8x256xf32>
    %301 = arith.addf %300, %299 : vector<8x256xf32>
    %302 = arith.mulf %301, %297 : vector<8x256xf32>
    %cst_95 = arith.constant 0.00134934322 : f32
    %303 = vector.broadcast %cst_95 : f32 to vector<8x256xf32>
    %304 = arith.addf %303, %302 : vector<8x256xf32>
    %305 = arith.mulf %304, %297 : vector<8x256xf32>
    %cst_96 = arith.constant -0.00367342844 : f32
    %306 = vector.broadcast %cst_96 : f32 to vector<8x256xf32>
    %307 = arith.addf %306, %305 : vector<8x256xf32>
    %308 = arith.mulf %307, %297 : vector<8x256xf32>
    %cst_97 = arith.constant 0.00573950773 : f32
    %309 = vector.broadcast %cst_97 : f32 to vector<8x256xf32>
    %310 = arith.addf %309, %308 : vector<8x256xf32>
    %311 = arith.mulf %310, %297 : vector<8x256xf32>
    %cst_98 = arith.constant -0.0076224613 : f32
    %312 = vector.broadcast %cst_98 : f32 to vector<8x256xf32>
    %313 = arith.addf %312, %311 : vector<8x256xf32>
    %314 = arith.mulf %313, %297 : vector<8x256xf32>
    %cst_99 = arith.constant 0.00943887047 : f32
    %315 = vector.broadcast %cst_99 : f32 to vector<8x256xf32>
    %316 = arith.addf %315, %314 : vector<8x256xf32>
    %317 = arith.mulf %316, %297 : vector<8x256xf32>
    %cst_100 = arith.constant 1.00167406 : f32
    %318 = vector.broadcast %cst_100 : f32 to vector<8x256xf32>
    %319 = arith.addf %318, %317 : vector<8x256xf32>
    %320 = arith.mulf %319, %297 : vector<8x256xf32>
    %cst_101 = arith.constant 2.83297682 : f32
    %321 = vector.broadcast %cst_101 : f32 to vector<8x256xf32>
    %322 = arith.addf %321, %320 : vector<8x256xf32>
    %cst_102 = arith.constant 5.000000e+00 : f32
    %323 = vector.broadcast %cst_102 : f32 to vector<8x256xf32>
    %324 = arith.cmpf olt, %267, %323 : vector<8x256xf32>
    %325 = arith.select %324, %294, %322 : vector<8x256xi1>, vector<8x256xf32>
    %326 = arith.mulf %325, %259 : vector<8x256xf32>
    %cst_103 = arith.constant 1.41421354 : f32
    %327 = vector.broadcast %cst_103 : f32 to vector<8x256xf32>
    %328 = arith.mulf %327, %326 : vector<8x256xf32>
    %c0_104 = arith.constant 0 : index
    %c0_105 = arith.constant 0 : index
    %329 = vector.load %arg2[%c0_104, %c0_105] : memref<1x256xf32, #tpu.memory_space<vmem>>, vector<1x256xf32>
    %330 = vector.broadcast %329 : vector<1x256xf32> to vector<8x256xf32>
    %331 = arith.mulf %328, %330 : vector<8x256xf32>
    %c0_106 = arith.constant 0 : index
    %c0_107 = arith.constant 0 : index
    %332 = vector.load %arg3[%c0_106, %c0_107] : memref<1x256xf32, #tpu.memory_space<vmem>>, vector<1x256xf32>
    %333 = vector.broadcast %332 : vector<1x256xf32> to vector<8x256xf32>
    %334 = arith.addf %331, %333 : vector<8x256xf32>
    %c0_108 = arith.constant 0 : index
    %c0_109 = arith.constant 0 : index
    %335 = vector.load %arg4[%c0_108, %c0_109] : memref<8x256xf32, #tpu.memory_space<vmem>>, vector<8x256xf32>
    tpu.vector_store %arg4[%c0_108, %c0_109], %334 {strides = array<i32>} : memref<8x256xf32, #tpu.memory_space<vmem>>, vector<8x256xf32>,
    return
  }
  func.func @transform_0(%arg0: i32) -> (i32, i32) {
    %c0_i32 = arith.constant 0 : i32
    %c0_i32_0 = arith.constant 0 : i32
    return %arg0, %c0_i32 : i32, i32
  }
  func.func @transform_1(%arg0: i32) -> (i32, i32) {
    %c0_i32 = arith.constant 0 : i32
    %c0_i32_0 = arith.constant 0 : i32
    %c0_i32_1 = arith.constant 0 : i32
    return %c0_i32, %c0_i32_0 : i32, i32
  }
  func.func @transform_2(%arg0: i32) -> (i32, i32) {
    %c0_i32 = arith.constant 0 : i32
    %c0_i32_0 = arith.constant 0 : i32
    %c0_i32_1 = arith.constant 0 : i32
    return %c0_i32, %c0_i32_0 : i32, i32
  }
  func.func @transform_3(%arg0: i32) -> (i32, i32) {
    %c0_i32 = arith.constant 0 : i32
    %c0_i32_0 = arith.constant 0 : i32
    return %arg0, %c0_i32 : i32, i32
  }
}

</mosaic_0001>

<llo_original>
// kernel: tpu_custom_call.1
$region0: #{tpu_custom_call.1}
  #allocation0 [shape = 'u32[]', space=smem, size = 0x4, offset = 0x4, fixed_abs, tag = 'smem constant byte address 0x4 - core index']
  #allocation1 [shape = 'u32[144,128]{1,0:T(1,128)}', space=vmem, size = 0x12000, scoped, tag = 'internal scratch']
  %s0 = inlined_call_operand.hbm [shape: f32[8,256], index: 0, kind: input, shape index: {}]
  %s1 = inlined_call_operand.vmem [shape: f32[1,256], index: 1, kind: input, shape index: {}]
  %s2 = inlined_call_operand.vmem [shape: f32[1,256], index: 2, kind: input, shape index: {}]
  %s3 = inlined_call_operand.hbm [shape: f32[8,256], index: 3, kind: output, shape index: {}]
  %s4 = sld [smem:[#allocation0]]
  $region26: #{tpu_custom_call.1} parent=0
    _
  %s6 = ssub.s32 1, %s4
  %s7 = scalar_select 0, %s6, %s4
  $region1: #{tpu_custom_call.1} parent=0
    #allocation2 [shape = 'u8[8192]{0}', space=vmem, size = 0x2000, scoped, tag = 'input window, operand 0, single buffered']
    #allocation3 [shape = 's32[1]{0}', space=sflag, size = 0x4, scoped, tag = 'scoped memory for tpu_custom_call.1']
    #allocation4 [shape = 's32[1]{0}', space=sflag, size = 0x4, scoped, tag = 'scoped memory for tpu_custom_call.1']
    #allocation5 [shape = 'u8[8192]{0}', space=vmem, size = 0x2000, scoped, tag = 'output window, operand 0, single buffered']
    %8 = vsyncpa [#allocation3], 0
    %9 = vsyncpa [#allocation4], 0
    // Predicated region
    $region2: #{tpu_custom_call.1} parent=1 // pred_check
      _
    $region3: #{tpu_custom_call.1} parent=1 // pred_check_branch
      %11 = sbr.rel (0) target = $region5
    $region4: #{tpu_custom_call.1} parent=1 // pred_region
      %s13 = ssub.s32 256, 256
      %14 = vsyncadd [#allocation3], %s13
      %s16 = sshll.u32 [#allocation2], 4
      %s17 = int_to_ptr.vmem [resolvable:$true] %s16
      %19 = dma.hbm_to_vmem [thread:$0]  %s0, 256, %s17, [#allocation3]
    $region5: #{tpu_custom_call.1} parent=1 // pred_fallthru
      _
    // Predicated region
    $region6: #{tpu_custom_call.1} parent=1 // pred_check
      _
    $region7: #{tpu_custom_call.1} parent=1 // pred_check_branch
      %21 = sbr.rel (0) target = $region9
    $region8: #{tpu_custom_call.1} parent=1 // pred_region
      _
    $region9: #{tpu_custom_call.1} parent=1 // pred_fallthru
      _
    // Predicated region
    $region10: #{tpu_custom_call.1} parent=1 // pred_check
      _
    $region11: #{tpu_custom_call.1} parent=1 // pred_check_branch
      %23 = sbr.rel (0) target = $region13
    $region12: #{tpu_custom_call.1} parent=1 // pred_region
      _
    $region13: #{tpu_custom_call.1} parent=1 // pred_fallthru
      _
    // Predicated region
    $region14: #{tpu_custom_call.1} parent=1 // pred_check
      _
    $region15: #{tpu_custom_call.1} parent=1 // pred_check_branch
      %25 = sbr.rel (0) target = $region17
    $region16: #{tpu_custom_call.1} parent=1 // pred_region
      %26 = dma.done [#allocation3], 256
    $region17: #{tpu_custom_call.1} parent=1 // pred_fallthru
      _
    %v27 = vld [vmem:[#allocation2] sm:$0xff]
    %v28 = vld [vmem:[#allocation2 + $0x8] sm:$0xff]
    %v29 = vadd.f32 %v27, %v28
    %30 = vadd.xlane.f32.xlu0 %v29
    %v31 = vpop.xlane.xlu0 %30
    %v32 = vmul.f32 %v31, 0.00390625
    %v33 = vsub.f32 %v27, %v32
    %v34 = vsub.f32 %v28, %v32
    %v35 = vmul.f32 %v33, %v33
    %v36 = vmul.f32 %v34, %v34
    %v37 = vadd.f32 %v35, %v36
    %38 = vadd.xlane.f32.xlu0 %v37
    %v39 = vpop.xlane.xlu0 %38
    %v40 = vmul.f32 %v39, 0.003921569
    %v41 = vrsqrt.pop %v40
    %v42 = vmul.f32 %v41, 7.938
    %v43 = vmul.f32 %v33, %v42
    %v44 = vmul.f32 %v34, %v42
    %v45 = vand.u32 2147483647, %v43
    %v46 = vand.u32 2147483647, %v44
    %v47 = vsub.f32 %v45, 3.500658
    %v48 = vsub.f32 %v46, 3.500658
    %v49 = vmax.f32 %v47, 0.0
    %v50 = vmax.f32 %v48, 0.0
    %v51 = vsub.f32 0.0, %v43
    %v52 = vsub.f32 0.0, %v44
    %v53 = vsub.f32 %v51, 3.500658
    %v54 = vsub.f32 %v52, 3.500658
    %v55 = vsub.f32 %v53, %v49
    %v56 = vsub.f32 %v54, %v50
    %v57 = vmul.f32 %v55, 1.442695
    %v58 = vpow.pop %v57
    %v59 = vmul.f32 %v56, 1.442695
    %v60 = vpow.pop %v59
    %v61 = vsub.f32 %v43, 3.500658
    %v62 = vsub.f32 %v44, 3.500658
    %v63 = vsub.f32 %v61, %v49
    %v64 = vsub.f32 %v62, %v50
    %v65 = vmul.f32 %v63, 1.442695
    %v66 = vpow.pop %v65
    %v67 = vmul.f32 %v64, 1.442695
    %v68 = vpow.pop %v67
    %v69 = vsub.f32 0.0, %v49
    %v70 = vsub.f32 0.0, %v50
    %v71 = vmul.f32 %v69, 1.442695
    %v72 = vpow.pop %v71
    %v73 = vmul.f32 %v70, 1.442695
    %v74 = vpow.pop %v73
    %v75 = vadd.f32 %v58, %v72
    %v76 = vadd.f32 %v60, %v74
    %v77 = vadd.f32 %v75, %v66
    %v78 = vadd.f32 %v76, %v68
    %v79 = vrcp.pop %v77
    %v80 = vrcp.pop %v78
    %v81 = vmul.f32 %v77, %v79
    %v82 = vmul.f32 %v78, %v80
    %v83 = vsub.f32 2.0, %v81
    %v84 = vsub.f32 2.0, %v82
    %v85 = vmul.f32 %v79, %v83
    %v86 = vmul.f32 %v80, %v84
    %v87 = vmul.f32 %v58, %v85
    %v88 = vmul.f32 %v60, %v86
    %v89 = vmul.f32 %v66, %v85
    %v90 = vmul.f32 %v68, %v86
    %v91 = vmul.f32 %v33, %v87
    %v92 = vmul.f32 %v34, %v88
    %v93 = vmul.f32 %v33, %v89
    %v94 = vmul.f32 %v34, %v90
    %v95 = vadd.f32 %v87, %v88
    %96 = vadd.xlane.f32.xlu0 %v95
    %v97 = vpop.xlane.xlu0 %96
    %v98 = vadd.f32 %v91, %v92
    %99 = vadd.xlane.f32.xlu0 %v98
    %v100 = vpop.xlane.xlu0 %99
    %v101 = vmul.f32 %v91, %v33
    %v102 = vmul.f32 %v92, %v34
    %v103 = vadd.f32 %v101, %v102
    %104 = vadd.xlane.f32.xlu0 %v103
    %v105 = vpop.xlane.xlu0 %104
    %v106 = vadd.f32 %v89, %v90
    %107 = vadd.xlane.f32.xlu0 %v106
    %v108 = vpop.xlane.xlu0 %107
    %v109 = vadd.f32 %v93, %v94
    %110 = vadd.xlane.f32.xlu0 %v109
    %v111 = vpop.xlane.xlu0 %110
    %v112 = vmul.f32 %v93, %v33
    %v113 = vmul.f32 %v94, %v34
    %v114 = vadd.f32 %v112, %v113
    %115 = vadd.xlane.f32.xlu0 %v114
    %v116 = vpop.xlane.xlu0 %115
    %v117 = vsub.f32 256.0, %v97
    %v118 = vsub.f32 %v117, %v108
    %v119 = vadd.f32 %v100, %v111
    %v120 = vsub.f32 0.0, %v119
    %v121 = vsub.f32 %v39, %v105
    %v122 = vsub.f32 %v121, %v116
    %v123 = vrcp.pop %v97
    %v124 = vmul.f32 1.0, %v123
    %v125 = vmul.f32 %v100, %v124
    %v126 = vmul.f32 %v105, %v124
    %v127 = vmul.f32 %v125, %v125
    %v128 = vsub.f32 %v126, %v127
    %v129 = vmax.f32 %v128, 0.0
    %v130 = vrsqrt.pop %v129
    %v131 = vmul.f32 %v97, 0.00390625
    %v132 = vmul.f32 %v130, 0.70710677
    %v133 = vsub.f32 0.0, %v132
    %v134 = vmul.f32 %v125, %v133
    %v135 = vsub.f32 0.0, %v134
    %v136 = vmul.f32 %v33, %v133
    %v137 = vmul.f32 %v34, %v133
    %v138 = vadd.f32 %v136, %v135
    %v139 = vadd.f32 %v137, %v135
    %v140 = vand.u32 2147483647, %v138
    %v141 = vand.u32 2147483647, %v139
    %v142 = vmul.f32 %v140, 0.3275911
    %v143 = vmul.f32 %v141, 0.3275911
    %v144 = vadd.f32 %v142, 1.0
    %v145 = vadd.f32 %v143, 1.0
    %v146 = vrcp.pop %v144
    %v147 = vrcp.pop %v145
    %v148 = vmul.f32 %v144, %v146
    %v149 = vmul.f32 %v145, %v147
    %v150 = vsub.f32 2.0, %v148
    %v151 = vsub.f32 2.0, %v149
    %v152 = vmul.f32 %v146, %v150
    %v153 = vmul.f32 %v147, %v151
    %v154 = vmul.f32 %v152, 1.0614054
    %v155 = vmul.f32 %v153, 1.0614054
    %v156 = vadd.f32 %v154, -1.4531521
    %v157 = vadd.f32 %v155, -1.4531521
    %v158 = vmul.f32 %v156, %v152
    %v159 = vmul.f32 %v157, %v153
    %v160 = vadd.f32 %v158, 1.4214138
    %v161 = vadd.f32 %v159, 1.4214138
    %v162 = vmul.f32 %v160, %v152
    %v163 = vmul.f32 %v161, %v153
    %v164 = vadd.f32 %v162, -0.28449672
    %v165 = vadd.f32 %v163, -0.28449672
    %v166 = vmul.f32 %v164, %v152
    %v167 = vmul.f32 %v165, %v153
    %v168 = vadd.f32 %v166, 0.2548296
    %v169 = vadd.f32 %v167, 0.2548296
    %v170 = vmul.f32 %v168, %v152
    %v171 = vmul.f32 %v169, %v153
    %v172 = vsub.f32 0.0, %v140
    %v173 = vsub.f32 0.0, %v141
    %v174 = vmul.f32 %v172, %v140
    %v175 = vmul.f32 %v173, %v141
    %v176 = vmul.f32 %v174, 1.442695
    %v177 = vpow.pop %v176
    %v178 = vmul.f32 %v175, 1.442695
    %v179 = vpow.pop %v178
    %v180 = vmul.f32 %v170, %v177
    %v181 = vmul.f32 %v171, %v179
    %v182 = vmul.f32 %v131, 0.5
    %vm183 = vcmp.ge.f32.partialorder %v138, 0.0
    %vm184 = vcmp.ge.f32.partialorder %v139, 0.0
    %v185 = vsub.f32 2.0, %v180
    %v186 = vsub.f32 2.0, %v181
    %v187 = vsel %vm183, %v180, %v185
    %v188 = vsel %vm184, %v181, %v186
    %v189 = vmul.f32 %v182, %v187
    %v190 = vmul.f32 %v182, %v188
    %v191 = vadd.f32 %v189, 0.0
    %v192 = vadd.f32 %v190, 0.0
    %v193 = vrcp.pop %v118
    %v194 = vmul.f32 1.0, %v193
    %v195 = vmul.f32 %v120, %v194
    %v196 = vmul.f32 %v122, %v194
    %v197 = vmul.f32 %v195, %v195
    %v198 = vsub.f32 %v196, %v197
    %v199 = vmax.f32 %v198, 0.0
    %v200 = vrsqrt.pop %v199
    %v201 = vmul.f32 %v118, 0.00390625
    %v202 = vmul.f32 %v200, 0.70710677
    %v203 = vsub.f32 0.0, %v202
    %v204 = vmul.f32 %v195, %v203
    %v205 = vsub.f32 0.0, %v204
    %v206 = vmul.f32 %v33, %v203
    %v207 = vmul.f32 %v34, %v203
    %v208 = vadd.f32 %v206, %v205
    %v209 = vadd.f32 %v207, %v205
    %v210 = vand.u32 2147483647, %v208
    %v211 = vand.u32 2147483647, %v209
    %v212 = vmul.f32 %v210, 0.3275911
    %v213 = vmul.f32 %v211, 0.3275911
    %v214 = vadd.f32 %v212, 1.0
    %v215 = vadd.f32 %v213, 1.0
    %v216 = vrcp.pop %v214
    %v217 = vrcp.pop %v215
    %v218 = vmul.f32 %v214, %v216
    %v219 = vmul.f32 %v215, %v217
    %v220 = vsub.f32 2.0, %v218
    %v221 = vsub.f32 2.0, %v219
    %v222 = vmul.f32 %v216, %v220
    %v223 = vmul.f32 %v217, %v221
    %v224 = vmul.f32 %v222, 1.0614054
    %v225 = vmul.f32 %v223, 1.0614054
    %v226 = vadd.f32 %v224, -1.4531521
    %v227 = vadd.f32 %v225, -1.4531521
    %v228 = vmul.f32 %v226, %v222
    %v229 = vmul.f32 %v227, %v223
    %v230 = vadd.f32 %v228, 1.4214138
    %v231 = vadd.f32 %v229, 1.4214138
    %v232 = vmul.f32 %v230, %v222
    %v233 = vmul.f32 %v231, %v223
    %v234 = vadd.f32 %v232, -0.28449672
    %v235 = vadd.f32 %v233, -0.28449672
    %v236 = vmul.f32 %v234, %v222
    %v237 = vmul.f32 %v235, %v223
    %v238 = vadd.f32 %v236, 0.2548296
    %v239 = vadd.f32 %v237, 0.2548296
    %v240 = vmul.f32 %v238, %v222
    %v241 = vmul.f32 %v239, %v223
    %v242 = vsub.f32 0.0, %v210
    %v243 = vsub.f32 0.0, %v211
    %v244 = vmul.f32 %v242, %v210
    %v245 = vmul.f32 %v243, %v211
    %v246 = vmul.f32 %v244, 1.442695
    %v247 = vpow.pop %v246
    %v248 = vmul.f32 %v245, 1.442695
    %v249 = vpow.pop %v248
    %v250 = vmul.f32 %v240, %v247
    %v251 = vmul.f32 %v241, %v249
    %v252 = vmul.f32 %v201, 0.5
    %vm253 = vcmp.ge.f32.partialorder %v208, 0.0
    %vm254 = vcmp.ge.f32.partialorder %v209, 0.0
    %v255 = vsub.f32 2.0, %v250
    %v256 = vsub.f32 2.0, %v251
    %v257 = vsel %vm253, %v250, %v255
    %v258 = vsel %vm254, %v251, %v256
    %v259 = vmul.f32 %v252, %v257
    %v260 = vmul.f32 %v252, %v258
    %v261 = vadd.f32 %v191, %v259
    %v262 = vadd.f32 %v192, %v260
    %v263 = vrcp.pop %v108
    %v264 = vmul.f32 1.0, %v263
    %v265 = vmul.f32 %v111, %v264
    %v266 = vmul.f32 %v116, %v264
    %v267 = vmul.f32 %v265, %v265
    %v268 = vsub.f32 %v266, %v267
    %v269 = vmax.f32 %v268, 0.0
    %v270 = vrsqrt.pop %v269
    %v271 = vmul.f32 %v108, 0.00390625
    %v272 = vmul.f32 %v270, 0.70710677
    %v273 = vsub.f32 0.0, %v272
    %v274 = vmul.f32 %v265, %v273
    %v275 = vsub.f32 0.0, %v274
    %v276 = vmul.f32 %v33, %v273
    %v277 = vmul.f32 %v34, %v273
    %v278 = vadd.f32 %v276, %v275
    %v279 = vadd.f32 %v277, %v275
    %v280 = vand.u32 2147483647, %v278
    %v281 = vand.u32 2147483647, %v279
    %v282 = vmul.f32 %v280, 0.3275911
    %v283 = vmul.f32 %v281, 0.3275911
    %v284 = vadd.f32 %v282, 1.0
    %v285 = vadd.f32 %v283, 1.0
    %v286 = vrcp.pop %v284
    %v287 = vrcp.pop %v285
    %v288 = vmul.f32 %v284, %v286
    %v289 = vmul.f32 %v285, %v287
    %v290 = vsub.f32 2.0, %v288
    %v291 = vsub.f32 2.0, %v289
    %v292 = vmul.f32 %v286, %v290
    %v293 = vmul.f32 %v287, %v291
    %v294 = vmul.f32 %v292, 1.0614054
    %v295 = vmul.f32 %v293, 1.0614054
    %v296 = vadd.f32 %v294, -1.4531521
    %v297 = vadd.f32 %v295, -1.4531521
    %v298 = vmul.f32 %v296, %v292
    %v299 = vmul.f32 %v297, %v293
    %v300 = vadd.f32 %v298, 1.4214138
    %v301 = vadd.f32 %v299, 1.4214138
    %v302 = vmul.f32 %v300, %v292
    %v303 = vmul.f32 %v301, %v293
    %v304 = vadd.f32 %v302, -0.28449672
    %v305 = vadd.f32 %v303, -0.28449672
    %v306 = vmul.f32 %v304, %v292
    %v307 = vmul.f32 %v305, %v293
    %v308 = vadd.f32 %v306, 0.2548296
    %v309 = vadd.f32 %v307, 0.2548296
    %v310 = vmul.f32 %v308, %v292
    %v311 = vmul.f32 %v309, %v293
    %v312 = vsub.f32 0.0, %v280
    %v313 = vsub.f32 0.0, %v281
    %v314 = vmul.f32 %v312, %v280
    %v315 = vmul.f32 %v313, %v281
    %v316 = vmul.f32 %v314, 1.442695
    %v317 = vpow.pop %v316
    %v318 = vmul.f32 %v315, 1.442695
    %v319 = vpow.pop %v318
    %v320 = vmul.f32 %v310, %v317
    %v321 = vmul.f32 %v311, %v319
    %v322 = vmul.f32 %v271, 0.5
    %vm323 = vcmp.ge.f32.partialorder %v278, 0.0
    %vm324 = vcmp.ge.f32.partialorder %v279, 0.0
    %v325 = vsub.f32 2.0, %v320
    %v326 = vsub.f32 2.0, %v321
    %v327 = vsel %vm323, %v320, %v325
    %v328 = vsel %vm324, %v321, %v326
    %v329 = vmul.f32 %v322, %v327
    %v330 = vmul.f32 %v322, %v328
    %v331 = vadd.f32 %v261, %v329
    %v332 = vadd.f32 %v262, %v330
    %v333 = vmax.f32 %v331, 0.0009765625
    %v334 = vmax.f32 %v332, 0.0009765625
    %v335 = vmin.f32 %v333, 0.99902344
    %v336 = vmin.f32 %v334, 0.99902344
    %v337 = vmul.f32 %v335, 2.0
    %v338 = vmul.f32 %v336, 2.0
    %v339 = vsub.f32 %v337, 1.0
    %v340 = vsub.f32 %v338, 1.0
    %v341 = vsub.f32 1.0, %v339
    %v342 = vsub.f32 1.0, %v340
    %v343 = vadd.f32 %v339, 1.0
    %v344 = vadd.f32 %v340, 1.0
    %v345 = vmul.f32 %v341, %v343
    %v346 = vmul.f32 %v342, %v344
    %v347 = vlog2.pop %v345
    %v348 = vmul.f32 %v347, 0.6931472
    %v349 = vlog2.pop %v346
    %v350 = vmul.f32 %v349, 0.6931472
    %v351 = vsub.f32 0.0, %v348
    %v352 = vsub.f32 0.0, %v350
    %v353 = vsub.f32 %v351, 2.5
    %v354 = vsub.f32 %v352, 2.5
    %v355 = vmul.f32 %v353, 2.8102264e-08
    %v356 = vmul.f32 %v354, 2.8102264e-08
    %v357 = vadd.f32 %v355, 3.4327394e-07
    %v358 = vadd.f32 %v356, 3.4327394e-07
    %v359 = vmul.f32 %v357, %v353
    %v360 = vmul.f32 %v358, %v354
    %v361 = vadd.f32 %v359, -3.5233877e-06
    %v362 = vadd.f32 %v360, -3.5233877e-06
    %v363 = vmul.f32 %v361, %v353
    %v364 = vmul.f32 %v362, %v354
    %v365 = vadd.f32 %v363, -4.3915065e-06
    %v366 = vadd.f32 %v364, -4.3915065e-06
    %v367 = vmul.f32 %v365, %v353
    %v368 = vmul.f32 %v366, %v354
    %v369 = vadd.f32 %v367, 0.00021858087
    %v370 = vadd.f32 %v368, 0.00021858087
    %v371 = vmul.f32 %v369, %v353
    %v372 = vmul.f32 %v370, %v354
    %v373 = vadd.f32 %v371, -0.001253725
    %v374 = vadd.f32 %v372, -0.001253725
    %v375 = vmul.f32 %v373, %v353
    %v376 = vmul.f32 %v374, %v354
    %v377 = vadd.f32 %v375, -0.0041776816
    %v378 = vadd.f32 %v376, -0.0041776816
    %v379 = vmul.f32 %v377, %v353
    %v380 = vmul.f32 %v378, %v354
    %v381 = vadd.f32 %v379, 0.24664073
    %v382 = vadd.f32 %v380, 0.24664073
    %v383 = vmul.f32 %v381, %v353
    %v384 = vmul.f32 %v382, %v354
    %v385 = vadd.f32 %v383, 1.5014094
    %v386 = vadd.f32 %v384, 1.5014094
    %v387 = vrsqrt.pop %v351
    %v388 = vmul.f32 %v351, %v387
    %vm389 = vcmp.eq.f32.partialorder %v351, inf
    %v390 = vsel %vm389, %v351, %v388
    %vm391 = vcmp.eq.f32.partialorder %v351, 0.0
    %v392 = vand.u32 %v351, 2147483648
    %v393 = vsel %vm391, %v392, %v390
    %v394 = vrsqrt.pop %v352
    %v395 = vmul.f32 %v352, %v394
    %vm396 = vcmp.eq.f32.partialorder %v352, inf
    %v397 = vsel %vm396, %v352, %v395
    %vm398 = vcmp.eq.f32.partialorder %v352, 0.0
    %v399 = vand.u32 %v352, 2147483648
    %v400 = vsel %vm398, %v399, %v397
    %v401 = vsub.f32 %v393, 3.0
    %v402 = vsub.f32 %v400, 3.0
    %v403 = vmul.f32 %v401, -0.00020021426
    %v404 = vmul.f32 %v402, -0.00020021426
    %v405 = vadd.f32 %v403, 0.00010095056
    %v406 = vadd.f32 %v404, 0.00010095056
    %v407 = vmul.f32 %v405, %v401
    %v408 = vmul.f32 %v406, %v402
    %v409 = vadd.f32 %v407, 0.0013493432
    %v410 = vadd.f32 %v408, 0.0013493432
    %v411 = vmul.f32 %v409, %v401
    %v412 = vmul.f32 %v410, %v402
    %v413 = vadd.f32 %v411, -0.0036734284
    %v414 = vadd.f32 %v412, -0.0036734284
    %v415 = vmul.f32 %v413, %v401
    %v416 = vmul.f32 %v414, %v402
    %v417 = vadd.f32 %v415, 0.0057395077
    %v418 = vadd.f32 %v416, 0.0057395077
    %v419 = vmul.f32 %v417, %v401
    %v420 = vmul.f32 %v418, %v402
    %v421 = vadd.f32 %v419, -0.0076224613
    %v422 = vadd.f32 %v420, -0.0076224613
    %v423 = vmul.f32 %v421, %v401
    %v424 = vmul.f32 %v422, %v402
    %v425 = vadd.f32 %v423, 0.0094388705
    %v426 = vadd.f32 %v424, 0.0094388705
    %v427 = vmul.f32 %v425, %v401
    %v428 = vmul.f32 %v426, %v402
    %v429 = vadd.f32 %v427, 1.001674
    %v430 = vadd.f32 %v428, 1.001674
    %v431 = vmul.f32 %v429, %v401
    %v432 = vmul.f32 %v430, %v402
    %v433 = vadd.f32 %v431, 2.8329768
    %v434 = vadd.f32 %v432, 2.8329768
    %vm435 = vcmp.lt.f32.partialorder %v351, 5.0
    %vm436 = vcmp.lt.f32.partialorder %v352, 5.0
    %v437 = vsel %vm435, %v385, %v433
    %v438 = vsel %vm436, %v386, %v434
    %v439 = vmul.f32 %v437, %v339
    %v440 = vmul.f32 %v438, %v340
    %v441 = vmul.f32 %v439, 1.4142135
    %v442 = vmul.f32 %v440, 1.4142135
    %v443 = vld [vmem:[%s1] sm:$0x3]
    %v445 = vlaneseq
    %v446 = vshrl.u32 %v445, 7
    %v447 = vsub.s32 0, %v446
    %v448 = vrot.slane %v443, %v447
    %v449 = vlaneseq
    %v450 = vshrl.u32 %v449, 7
    %v451 = vsub.s32 1, %v450
    %v452 = vrot.slane %v443, %v451
    %v455 = vmul.f32 %v441, %v448
    %v456 = vmul.f32 %v442, %v452
    %v457 = vld [vmem:[%s2] sm:$0x3]
    %v459 = vlaneseq
    %v460 = vshrl.u32 %v459, 7
    %v461 = vsub.s32 0, %v460
    %v462 = vrot.slane %v457, %v461
    %v463 = vlaneseq
    %v464 = vshrl.u32 %v463, 7
    %v465 = vsub.s32 1, %v464
    %v466 = vrot.slane %v457, %v465
    %v469 = vadd.f32 %v455, %v462
    %v470 = vadd.f32 %v456, %v466
    %471 = vst [vmem:[#allocation5] sm:$0xff] %v469
    %472 = vst [vmem:[#allocation5 + $0x8] sm:$0xff] %v470
    // Predicated region
    $region18: #{tpu_custom_call.1} parent=1 // pred_check
      _
    $region19: #{tpu_custom_call.1} parent=1 // pred_check_branch
      %474 = sbr.rel (0) target = $region21
    $region20: #{tpu_custom_call.1} parent=1 // pred_region
      %s476 = ssub.s32 256, 256
      %477 = vsyncadd [#allocation4], %s476
      %s479 = sshll.u32 [#allocation5], 4
      %s480 = int_to_ptr.vmem [resolvable:$true] %s479
      %482 = dma.vmem_to_hbm [thread:$0]  %s480, 256, %s3, [#allocation4]
    $region21: #{tpu_custom_call.1} parent=1 // pred_fallthru
      _
    // Predicated region
    $region22: #{tpu_custom_call.1} parent=1 // pred_check
      _
    $region23: #{tpu_custom_call.1} parent=1 // pred_check_branch
      %484 = sbr.rel (0) target = $region25
    $region24: #{tpu_custom_call.1} parent=1 // pred_region
      %485 = dma.done [#allocation4], 256
    $region25: #{tpu_custom_call.1} parent=1 // pred_fallthru
      _
    %486 = vsyncpa [#allocation3], 1
    %487 = vsyncpa [#allocation4], 1

</llo_original>
